<compile_context>
chip_gen: v6e
topology: v6e:2x2x1
jax: 0.10.0
libtpu: 0.0.40
codegen_flags: <defaults>
</compile_context>

<pallas_src>
import jax
import jax.numpy as jnp
from jax.experimental import pallas as pl
from jax.experimental.pallas import tpu as pltpu

_EPS = 1e-12            # F.normalize eps
_EPS_SQ = _EPS * _EPS   # clamp on squared norm for the rsqrt path
_TM_MAX = 512           # max batch rows per tile (multiple of 8 and 128)


def _round_up(x: int, m: int) -> int:
    return ((x + m - 1) // m) * m


def _normed_linear_kernel(x_ref, wn_ref, o_ref):
    # x_ref:  (TM, Din)      f32  -- one streamed batch tile
    # wn_ref: (Din, Dout_p)  bf16 -- column-normalized weight, VMEM-resident
    # o_ref:  (TM, Dout_p)   f32  -- lane-dense output tile
    x = x_ref[...].astype(jnp.float32)
    sq = jnp.sum(x * x, axis=1, keepdims=True)            # (TM, 1)
    inv_norm = jax.lax.rsqrt(jnp.maximum(sq, _EPS_SQ))    # EUP; == 1/max(||x||, eps)
    xn = (x * inv_norm).astype(jnp.bfloat16)              # bf16 MXU operand
    o_ref[...] = jnp.dot(
        xn, wn_ref[...], preferred_element_type=jnp.float32
    ).astype(o_ref.dtype)


@jax.jit
def normed_linear(x: jax.Array, weight: jax.Array) -> jax.Array:
    """out = F.normalize(x, dim=1) @ F.normalize(weight, dim=0)."""
    n, din = x.shape
    din_w, dout = weight.shape
    assert din == din_w, (din, din_w)

    # One-time weight column normalization (hoisted out of the kernel).
    w = weight.astype(jnp.float32)
    w_sq = jnp.sum(w * w, axis=0, keepdims=True)
    wn = w * jax.lax.rsqrt(jnp.maximum(w_sq, _EPS_SQ))

    # TPU-friendly padding.
    dout_p = _round_up(dout, 128)        # lane-dense output stores
    n_p = _round_up(n, 8)                # sublane alignment
    if n_p > _TM_MAX:
        tm = _TM_MAX
        n_p = _round_up(n, tm)
    else:
        tm = n_p

    x_p = jnp.pad(x.astype(jnp.float32), ((0, n_p - n), (0, 0)))
    wn_p = jnp.pad(wn, ((0, 0), (0, dout_p - dout))).astype(jnp.bfloat16)

    grid = (n_p // tm,)

    # VMEM budget: double-buffered x & out tiles + resident bf16 weight.
    vmem_bytes = 2 * tm * din * 4 + 2 * din * dout_p * 2 + 2 * tm * dout_p * 4
    vmem_limit = int(min(100 * 1024 * 1024, max(32 * 1024 * 1024, 2 * vmem_bytes)))

    out_p = pl.pallas_call(
        _normed_linear_kernel,
        out_shape=jax.ShapeDtypeStruct((n_p, dout_p), jnp.float32),
        grid=grid,
        in_specs=[
            pl.BlockSpec((tm, din), lambda i: (i, 0)),      # streamed x tiles
            pl.BlockSpec((din, dout_p), lambda i: (0, 0)),  # resident weight
        ],
        out_specs=pl.BlockSpec((tm, dout_p), lambda i: (i, 0)),
        compiler_params=pltpu.CompilerParams(
            dimension_semantics=("parallel",),              # v7x: split N over 2 TCs
            vmem_limit_bytes=vmem_limit,
        ),
    )(x_p, wn_p)

    return out_p[:n, :dout]


def init_normed_linear_weight(key, in_features: int, out_features: int) -> jax.Array:
    """Re-implements: torch.Tensor(in,out).uniform_(-1,1).renorm_(2,1,1e-5).mul_(1e5)
    which makes every column of the weight unit L2-norm."""
    w = jax.random.uniform(
        key, (in_features, out_features), minval=-1.0, maxval=1.0,
        dtype=jnp.float32,
    )
    col_norm = jnp.sqrt(jnp.sum(w * w, axis=0, keepdims=True))
    return w / jnp.maximum(col_norm, 1e-12)


if __name__ == "__main__":
    key = jax.random.PRNGKey(0)
    kx, kw = jax.random.split(key)

    batch, in_features, out_features = 8, 32, 16
    x = jax.random.normal(kx, (batch, in_features), dtype=jnp.float32)
    weight = init_normed_linear_weight(kw, in_features, out_features)

    out = jax.block_until_ready(normed_linear(x, weight))
    assert out.shape == (batch, out_features)

    # Pure-JAX references.
    xn_ref = x / jnp.maximum(jnp.linalg.norm(x, axis=1, keepdims=True), 1e-12)
    wn_ref = weight / jnp.maximum(
        jnp.linalg.norm(weight, axis=0, keepdims=True), 1e-12
    )
    ref_f32 = xn_ref @ wn_ref                               # ideal f32 result
    ref_bf16 = (xn_ref.astype(jnp.bfloat16).astype(jnp.float32)
                @ wn_ref.astype(jnp.bfloat16).astype(jnp.float32))

    # Kernel uses bf16 MXU operands with f32 accumulation.
    assert jnp.allclose(out, ref_bf16, atol=5e-3, rtol=1e-2)
    assert jnp.allclose(out, ref_f32, atol=2e-2, rtol=0.0)

    print("KERNEL_OK")
</pallas_src>

<mosaic_0001>
module attributes {stable_mosaic.version = 11 : i64} {
  func.func @_normed_linear_kernel(%arg0: i32, %arg1: memref<8x32xf32, #tpu.memory_space<vmem>>, %arg2: memref<32x128xbf16, #tpu.memory_space<vmem>>, %arg3: memref<8x128xf32, #tpu.memory_space<vmem>>) attributes {dimension_semantics = [#tpu.dimension_semantics<parallel>], iteration_bounds = array<i64: 1>, scalar_prefetch = 0 : i64, scratch_operands = 0 : i64, tpu.core_type = #tpu.core_type<tc>, window_params = [{transform_indices = @transform_0, window_bounds = array<i64: 8, 32>}, {pipeline_mode = #tpu.pipeline_mode<synchronous>, transform_indices = @transform_1, window_bounds = array<i64: 32, 128>}, {transform_indices = @transform_2, window_bounds = array<i64: 8, 128>}]} {
    %c0 = arith.constant 0 : index
    %c0_0 = arith.constant 0 : index
    %0 = vector.load %arg1[%c0, %c0_0] : memref<8x32xf32, #tpu.memory_space<vmem>>, vector<8x32xf32>
    %1 = arith.mulf %0, %0 : vector<8x32xf32>
    %cst = arith.constant dense<0.000000e+00> : vector<8xf32>
    %2 = vector.multi_reduction <add>, %1, %cst [1] : vector<8x32xf32> to vector<8xf32>
    %3 = vector.shape_cast %2 : vector<8xf32> to vector<8x1xf32>
    %cst_1 = arith.constant 1.000000e-24 : f32
    %4 = vector.broadcast %cst_1 : f32 to vector<8x1xf32>
    %5 = arith.maximumf %3, %4 : vector<8x1xf32>
    %6 = math.rsqrt %5 : vector<8x1xf32>
    %7 = vector.broadcast %6 : vector<8x1xf32> to vector<8x32xf32>
    %8 = arith.mulf %0, %7 : vector<8x32xf32>
    %9 = arith.truncf %8 : vector<8x32xf32> to vector<8x32xbf16>
    %c0_2 = arith.constant 0 : index
    %c0_3 = arith.constant 0 : index
    %10 = vector.load %arg2[%c0_2, %c0_3] : memref<32x128xbf16, #tpu.memory_space<vmem>>, vector<32x128xbf16>
    %cst_4 = arith.constant dense<0.000000e+00> : vector<8x128xf32>
    %11 = tpu.matmul %9, %10, %cst_4 {dimension_numbers = #tpu.dot_dimension_numbers<[1], [0], [0], [1], [0, 0, 1, 1], [], []>} : vector<8x32xbf16>, vector<32x128xbf16>, vector<8x128xf32> -> vector<8x128xf32>
    %c0_5 = arith.constant 0 : index
    %c0_6 = arith.constant 0 : index
    %12 = vector.load %arg3[%c0_5, %c0_6] : memref<8x128xf32, #tpu.memory_space<vmem>>, vector<8x128xf32>
    tpu.vector_store %arg3[%c0_5, %c0_6], %11 {strides = array<i32>} : memref<8x128xf32, #tpu.memory_space<vmem>>, vector<8x128xf32>,
    return
  }
  func.func @transform_0(%arg0: i32) -> (i32, i32) {
    %c0_i32 = arith.constant 0 : i32
    %c0_i32_0 = arith.constant 0 : i32
    return %arg0, %c0_i32 : i32, i32
  }
  func.func @transform_1(%arg0: i32) -> (i32, i32) {
    %c0_i32 = arith.constant 0 : i32
    %c0_i32_0 = arith.constant 0 : i32
    %c0_i32_1 = arith.constant 0 : i32
    return %c0_i32, %c0_i32_0 : i32, i32
  }
  func.func @transform_2(%arg0: i32) -> (i32, i32) {
    %c0_i32 = arith.constant 0 : i32
    %c0_i32_0 = arith.constant 0 : i32
    return %arg0, %c0_i32 : i32, i32
  }
}

</mosaic_0001>

<llo_original>
// kernel: normed_linear.1
$region0: #{normed_linear.1}
  #allocation0 [shape = 'u32[]', space=smem, size = 0x4, offset = 0x4, fixed_abs, tag = 'smem constant byte address 0x4 - core index']
  #allocation1 [shape = 'u32[144,128]{1,0:T(1,128)}', space=vmem, size = 0x12000, scoped, tag = 'internal scratch']
  %s0 = inlined_call_operand.vmem [shape: f32[8,32], index: 0, kind: input, shape index: {}]
  %s1 = inlined_call_operand.vmem [shape: bf16[32,128], index: 1, kind: input, shape index: {}]
  %s2 = inlined_call_operand.hbm [shape: f32[8,128], index: 2, kind: output, shape index: {}]
  %s3 = sld [smem:[#allocation0]]
  $region18: #{normed_linear.1} parent=0
    _
  %s5 = ssub.s32 1, %s3
  %s6 = scalar_select 0, %s5, %s3
  $region1: #{normed_linear.1} parent=0
    #allocation2 [shape = 'u8[4096]{0}', space=vmem, size = 0x1000, scoped, tag = 'output window, operand 0, single buffered']
    #allocation3 [shape = 's32[1]{0}', space=sflag, size = 0x4, scoped, tag = 'scoped memory for normed_linear.1']
    %7 = vsyncpa [#allocation3], 0
    // Predicated region
    $region2: #{normed_linear.1} parent=1 // pred_check
      _
    $region3: #{normed_linear.1} parent=1 // pred_check_branch
      %9 = sbr.rel (0) target = $region5
    $region4: #{normed_linear.1} parent=1 // pred_region
      _
    $region5: #{normed_linear.1} parent=1 // pred_fallthru
      _
    // Predicated region
    $region6: #{normed_linear.1} parent=1 // pred_check
      _
    $region7: #{normed_linear.1} parent=1 // pred_check_branch
      %11 = sbr.rel (0) target = $region9
    $region8: #{normed_linear.1} parent=1 // pred_region
      _
    $region9: #{normed_linear.1} parent=1 // pred_fallthru
      _
    %v13 = vld [vmem:[%s0] sm:$0xff]
    %v14 = vmul.f32 %v13, %v13
    %vm15 = vcmask 261120
    %v16 = vsel %vm15, %v14, 0.0
    %17 = vadd.xlane.f32.xlu0 %v16
    %v18 = vpop.xlane.xlu0 %17
    %v19 = vmax.f32 %v18, 1e-24
    %v20 = vrsqrt.pop %v19
    %v21 = vmul.f32 %v13, %v20
    %v22 = vpack.c.bf16 %v21, %v21
    %v23 = vld [vmem:[%s1] sm:$0xf]
    %v24 = vld [vmem:[%s1 + $0x4] sm:$0xf]
    %v25 = vld [vmem:[%s1 + $0x8] sm:$0xf]
    %v26 = vld [vmem:[%s1 + $0xc] sm:$0xf]
    %v31 = vunpack.c.l.b16 %v23
    %v32 = vunpack.c.l.b16 %v24
    %v33 = vunpack.c.l.b16 %v25
    %v34 = vunpack.c.l.b16 %v26
    %v35 = vpack.c.b16 %v32, %v31
    %v36 = vpack.c.b16 %v34, %v33
    %v40 = vsel %vm15, %v22, 0
    %42 = vmatprep.subr.bf16.mxu0 0
    %43 = vmatpush1.bf16.msra.mxu0 0
    %44 = vmatprep.subr.bf16.mxu0 0
    %45 = vmatpush1.bf16.msra.mxu0 0
    %46 = vmatprep.subr.bf16.mxu0 0
    %47 = vmatpush1.bf16.msra.mxu0 0
    %48 = vmatprep.subr.bf16.mxu0 0
    %49 = vmatpush1.bf16.msra.mxu0 0
    %50 = vmatprep.subr.bf16.mxu0 0
    %51 = vmatpush1.bf16.msra.mxu0 0
    %52 = vmatprep.subr.bf16.mxu0 0
    %53 = vmatpush1.bf16.msra.mxu0 0
    %54 = vmatprep.subr.bf16.mxu0 0
    %55 = vmatpush1.bf16.msra.mxu0 %v36
    %56 = vmatprep.subr.bf16.mxu0 0
    %57 = vmatpush1.bf16.msra.mxu0 %v35
    %58 = vmatprep.subr.bf16.mxu0 0
    %59 = vmatpush2.bf16.msra.mxu0 0
    %60 = vmatprep.subr.bf16.mxu0 0
    %61 = vmatpush2.bf16.msra.mxu0 0
    %62 = vmatprep.subr.bf16.mxu0 0
    %63 = vmatpush2.bf16.msra.mxu0 0
    %64 = vmatprep.subr.bf16.mxu0 0
    %65 = vmatpush2.bf16.msra.mxu0 0
    %66 = vmatprep.subr.bf16.mxu0 0
    %67 = vmatpush2.bf16.msra.mxu0 0
    %68 = vmatprep.subr.bf16.mxu0 0
    %69 = vmatpush2.bf16.msra.mxu0 0
    %70 = vmatprep.subr.bf16.mxu0 0
    %71 = vmatpush2.bf16.msra.mxu0 0
    %72 = vmatprep.subr.bf16.mxu0 0
    %73 = vmatpush2.bf16.msra.mxu0 0
    %74 = vmatprep.mubr.bf16.mxu0 0
    %75 = vmatmul.mubr.bf16.gmra.mxu0 %v40
    %v76 = vpop.f32.mrf.mxu0
    %v77 = vadd.f32 0.0, %v76
    %v78 = vpop.f32.mrf.mxu0
    %v79 = vpop.f32.mrf.mxu0
    %v80 = vpop.f32.mrf.mxu0
    %81 = vdwg.mxu0
    %82 = vst [vmem:[#allocation2] sm:$0xff] %v77
    // Predicated region
    $region10: #{normed_linear.1} parent=1 // pred_check
      _
    $region11: #{normed_linear.1} parent=1 // pred_check_branch
      %84 = sbr.rel (0) target = $region13
    $region12: #{normed_linear.1} parent=1 // pred_region
      %s86 = ssub.s32 128, 128
      %87 = vsyncadd [#allocation3], %s86
      %s89 = sshll.u32 [#allocation2], 4
      %s90 = int_to_ptr.vmem [resolvable:$true] %s89
      %92 = dma.vmem_to_hbm [thread:$0]  %s90, 128, %s2, [#allocation3]
    $region13: #{normed_linear.1} parent=1 // pred_fallthru
      _
    // Predicated region
    $region14: #{normed_linear.1} parent=1 // pred_check
      _
    $region15: #{normed_linear.1} parent=1 // pred_check_branch
      %94 = sbr.rel (0) target = $region17
    $region16: #{normed_linear.1} parent=1 // pred_region
      %95 = dma.done [#allocation3], 128
    $region17: #{normed_linear.1} parent=1 // pred_fallthru
      _
    %96 = vsyncpa [#allocation3], 1

</llo_original>
